<compile_context>
chip_gen: v7x
topology: tpu7x:2x2x1
jax: 0.10.0
libtpu: 0.0.40
codegen_flags: <defaults>
</compile_context>

<pallas_src>
import functools

import numpy as np
import jax
import jax.numpy as jnp
from jax.experimental import pallas as pl
from jax.experimental.pallas import tpu as pltpu

# ---- IntSoftmax constants (from the PyTorch __init__) -----------------------
OUTPUT_BIT = 8                      # output_bit
ACT_BIT = 16                        # QuantAct(16, ...)
X0 = -0.6931                        # self.x0 (= -ln 2)
N_ITER = 30                         # self.n
COEF0 = 0.35815147
COEF1 = 0.96963238 / COEF0          # self.coef[1] /= coef[0]
COEF2 = 1.0 / COEF0                 # self.coef[2] /= coef[0]


def _round_up(a, b):
    return (a + b - 1) // b * b


# ----------------------------- Pallas kernels --------------------------------
def _softmax_kernel(x_ref, o_ref):
    """quant_mode='none' path: plain softmax over the last axis."""
    x = x_ref[...].astype(jnp.float32)
    m = jnp.max(x, axis=-1, keepdims=True)
    ex = jnp.exp(x - m)
    denom = jnp.sum(ex, axis=-1, keepdims=True)
    inv = pl.reciprocal(denom, approx=True)       # EUP slot (free on mem-bound)
    inv = inv * (2.0 - denom * inv)               # one Newton step -> f32 accurate
    o_ref[...] = (ex * inv).astype(o_ref.dtype)


def _int_softmax_kernel(p_ref, x_ref, o_ref):
    """Symmetric path: int_exp + QuantAct(16) requant + integer softmax.

    p_ref (SMEM, scalar-prefetched, f32[7]):
      [inv_sf, x0_int, inv_x0_int, b_int, c_int, inv_exp_sf, requant_scale]
    """
    x = x_ref[...].astype(jnp.float32)            # all math in f32 (v5e: no bf16 VPU/EUP)

    # ---- int_exp / int_polynomial (f32 emulation of the integer pipeline) ----
    x_int = x * p_ref[0]
    x_int = x_int - jnp.max(x_int, axis=-1, keepdims=True)
    x_int = jnp.maximum(x_int, jnp.float32(N_ITER) * p_ref[1])
    q = jnp.floor(x_int * p_ref[2])               # floor_ste forward
    r = x_int - p_ref[1] * q
    z = r * (r + p_ref[3]) + p_ref[4]             # int_polynomial
    exp_int = jnp.maximum(jnp.floor(z * jnp.exp2(jnp.float32(N_ITER) - q)), 0.0)

    # ---- QuantAct(16) fixedpoint_mul requant (exp*act_sf/act_sf cancels) ----
    # TODO(synk): reference fixedpoint_mul does z_int*m/2**e in float64; f32 here.
    z_int = jnp.round(exp_int * p_ref[5])
    # z_int >= 0 and requant_scale > 0 -> only the upper clip is reachable.
    q16 = jnp.minimum(jnp.round(z_int * p_ref[6]), 2.0 ** 15 - 1.0)

    # ---- integer softmax normalization ----
    s = jnp.sum(q16, axis=-1, keepdims=True)
    factor = jnp.floor((2.0 ** 32) / s)           # exact divide (do NOT approximate)
    out_int = jnp.floor(q16 * (factor * (2.0 ** -(32 - OUTPUT_BIT))))
    o_ref[...] = (out_int * (2.0 ** -OUTPUT_BIT)).astype(o_ref.dtype)


# ------------------------------ Python wrapper --------------------------------
def int_softmax(x, scaling_factor, quant_mode="symmetric", out_dtype=None,
                target_block_bytes=4 << 20):
    orig_shape = x.shape
    C = int(orig_shape[-1])
    R = int(np.prod(orig_shape[:-1])) if len(orig_shape) > 1 else 1
    out_dtype = x.dtype if out_dtype is None else out_dtype

    x2 = jnp.reshape(x, (R, C))                   # collapse only; no pad, no astype

    # Row tile: lane footprint uses the padded (8,128) layout.  Keep blocks at
    # ~target_block_bytes (default 4 MiB so double-buffered in+out plus
    # block-sized temporaries fit v7x's 64 MiB VMEM), and cap tile_rows so the
    # grid has enough steps to pipeline / feed both v7x TensorCores.
    C_lanes = _round_up(C, 128)
    rows_by_bytes = max(8, (target_block_bytes // (4 * C_lanes)) // 8 * 8)
    rows_by_grid = max(8, _round_up(-(-R // 8), 8))        # aim for >= ~8 grid steps
    tile_rows = int(min(rows_by_bytes, rows_by_grid, _round_up(R, 8)))
    grid = (pl.cdiv(R, tile_rows),)

    block_bytes = tile_rows * C_lanes * 4
    # ~8x block bytes: double-buffered in+out plus the block-sized temporaries
    # across the row-max / row-sum reduction boundaries.  Stay well under the
    # 64 MiB physical VMEM per TensorCore on v7x.
    vmem_limit = int(min(max(32 << 20, 8 * block_bytes), 48 << 20))
    cparams = pltpu.CompilerParams(dimension_semantics=("parallel",),
                                   vmem_limit_bytes=vmem_limit)

    if quant_mode == "none" or scaling_factor is None:
        out = pl.pallas_call(
            _softmax_kernel,
            out_shape=jax.ShapeDtypeStruct((R, C), out_dtype),
            grid=grid,
            in_specs=[pl.BlockSpec((tile_rows, C), lambda i: (i, 0))],
            out_specs=pl.BlockSpec((tile_rows, C), lambda i: (i, 0)),
            compiler_params=cparams,
        )(x2)
        return jnp.reshape(out, orig_shape)

    assert quant_mode == "symmetric", f"unsupported quant mode: {quant_mode}"

    # ---- device-scalar precompute (no extra kernel pass, no host readback) ----
    sf = jnp.asarray(scaling_factor, jnp.float32).reshape(())
    inv_sf = 1.0 / sf
    x0_int = jnp.floor(X0 / sf)
    inv_x0_int = 1.0 / x0_int
    b_int = jnp.floor(COEF1 / sf)
    c_int = jnp.floor(COEF2 / (sf * sf))
    exp_sf = (COEF0 * sf * sf) * (2.0 ** -N_ITER)          # exp_scaling_factor

    # Closed-form QuantAct(16) running-stat max of exp_int (exp_int >= 0, so
    # QuantAct's max(|min|,|max|) is just the max; achieved at every row's max
    # element: x_int=0 -> q=0, r=0, z=c_int -> exp_int = c_int * 2^n).
    gmax = c_int * jnp.float32(2.0 ** N_ITER)
    act_sf = jnp.maximum(gmax, 1e-8) / (2.0 ** (ACT_BIT - 1) - 1.0)

    mant, expo = jnp.frexp(exp_sf / act_sf)                # batch_frexp dyadic scale
    m_int = jnp.floor(mant * (2.0 ** 31) + 0.5)            # Decimal ROUND_HALF_UP
    requant_scale = jnp.ldexp(m_int, expo - 31)            # m * 2**-(31 - e)
    params = jnp.stack([inv_sf, x0_int, inv_x0_int, b_int, c_int,
                        1.0 / exp_sf, requant_scale]).astype(jnp.float32)

    out = pl.pallas_call(
        _int_softmax_kernel,
        out_shape=jax.ShapeDtypeStruct((R, C), out_dtype),
        grid_spec=pltpu.PrefetchScalarGridSpec(
            num_scalar_prefetch=1,                          # params -> SMEM
            grid=grid,
            in_specs=[pl.BlockSpec((tile_rows, C), lambda i, p: (i, 0))],
            out_specs=pl.BlockSpec((tile_rows, C), lambda i, p: (i, 0)),
        ),
        compiler_params=cparams,
    )(params, x2)
    return jnp.reshape(out, orig_shape)


# ------------------------- numpy reference (for check) ------------------------
def _int_softmax_ref_numpy(x, sf):
    x = np.asarray(x, np.float64)
    sf = float(sf)
    x_int = x / sf
    x_int = x_int - x_int.max(-1, keepdims=True)
    x0_int = np.floor(X0 / sf)
    x_int = np.maximum(x_int, N_ITER * x0_int)
    q = np.floor(x_int / x0_int)
    r = x_int - x0_int * q
    b_int = np.floor(COEF1 / sf)
    c_int = np.floor(COEF2 / sf ** 2)
    z = r * (r + b_int) + c_int
    exp_int = np.maximum(np.floor(z * 2.0 ** (N_ITER - q)), 0.0)
    exp_sf = (COEF0 * sf ** 2) / 2.0 ** N_ITER
    # QuantAct(16): running stats start at 0 == 0 -> buffers become data min/max
    max_abs = max(abs(exp_int.min()), abs(exp_int.max()))
    act_sf = max(max_abs, 1e-8) / (2 ** 15 - 1)
    z_int = np.round(exp_int / exp_sf)
    mant, expo = np.frexp(exp_sf / act_sf)
    m = np.floor(mant * 2.0 ** 31 + 0.5)
    e = 31.0 - expo
    q16 = np.clip(np.round(z_int * m / 2.0 ** e), -2 ** 15, 2 ** 15 - 1)
    exp_int2 = (q16 * act_sf) / act_sf
    s = exp_int2.sum(-1, keepdims=True)
    factor = np.floor(2.0 ** 32 / s)
    out_int = np.floor(exp_int2 * factor / 2.0 ** (32 - OUTPUT_BIT))
    return out_int / 2.0 ** OUTPUT_BIT


if __name__ == "__main__":
    key = jax.random.PRNGKey(0)
    B, H, Sq, Sk = 2, 4, 8, 32               # attention-score-like shape
    x = jax.random.normal(key, (B, H, Sq, Sk), dtype=jnp.float32) * 2.0
    scaling_factor = 0.05                    # input activation scaling factor

    int_softmax_jit = jax.jit(int_softmax, static_argnames=("quant_mode",))

    # quantized (symmetric) path
    out_q = jax.block_until_ready(
        int_softmax_jit(x, scaling_factor, quant_mode="symmetric"))
    # dequantized ('none') path
    out_f = jax.block_until_ready(int_softmax_jit(x, None, quant_mode="none"))

    ref_q = _int_softmax_ref_numpy(np.asarray(x), scaling_factor)
    np.testing.assert_allclose(np.asarray(out_q), ref_q, atol=0.02)
    np.testing.assert_allclose(np.asarray(out_f),
                               np.asarray(jax.nn.softmax(x, axis=-1)),
                               atol=1e-5, rtol=1e-5)
    print("KERNEL_OK")
</pallas_src>

<mosaic_0001>
module attributes {stable_mosaic.version = 11 : i64} {
  func.func @_int_softmax_kernel(%arg0: i32, %arg1: memref<7xf32, #tpu.memory_space<smem>>, %arg2: memref<8x32xf32, #tpu.memory_space<vmem>>, %arg3: memref<8x32xf32, #tpu.memory_space<vmem>>) attributes {dimension_semantics = [#tpu.dimension_semantics<parallel>], iteration_bounds = array<i64: 8>, scalar_prefetch = 1 : i64, scratch_operands = 0 : i64, tpu.core_type = #tpu.core_type<tc>, window_params = [{transform_indices = @transform_0, window_bounds = array<i64: 8, 32>}, {transform_indices = @transform_1, window_bounds = array<i64: 8, 32>}]} {
    %c0 = arith.constant 0 : index
    %c0_0 = arith.constant 0 : index
    %0 = vector.load %arg2[%c0, %c0_0] : memref<8x32xf32, #tpu.memory_space<vmem>>, vector<8x32xf32>
    %c0_1 = arith.constant 0 : index
    %1 = memref.load %arg1[%c0_1] : memref<7xf32, #tpu.memory_space<smem>>
    %2 = vector.broadcast %1 : f32 to vector<8x32xf32>
    %3 = arith.mulf %0, %2 : vector<8x32xf32>
    %cst = arith.constant dense<0xFF800000> : vector<8xf32>
    %4 = vector.multi_reduction <maximumf>, %3, %cst [1] : vector<8x32xf32> to vector<8xf32>
    %5 = vector.shape_cast %4 : vector<8xf32> to vector<8x1xf32>
    %6 = vector.broadcast %5 : vector<8x1xf32> to vector<8x32xf32>
    %7 = arith.subf %3, %6 : vector<8x32xf32>
    %c1 = arith.constant 1 : index
    %8 = memref.load %arg1[%c1] : memref<7xf32, #tpu.memory_space<smem>>
    %cst_2 = arith.constant 3.000000e+01 : f32
    %9 = arith.mulf %cst_2, %8 : f32
    %10 = vector.broadcast %9 : f32 to vector<8x32xf32>
    %11 = arith.maximumf %7, %10 : vector<8x32xf32>
    %c2 = arith.constant 2 : index
    %12 = memref.load %arg1[%c2] : memref<7xf32, #tpu.memory_space<smem>>
    %13 = vector.broadcast %12 : f32 to vector<8x32xf32>
    %14 = arith.mulf %11, %13 : vector<8x32xf32>
    %15 = math.floor %14 : vector<8x32xf32>
    %c1_3 = arith.constant 1 : index
    %16 = memref.load %arg1[%c1_3] : memref<7xf32, #tpu.memory_space<smem>>
    %17 = vector.broadcast %16 : f32 to vector<8x32xf32>
    %18 = arith.mulf %17, %15 : vector<8x32xf32>
    %19 = arith.subf %11, %18 : vector<8x32xf32>
    %c3 = arith.constant 3 : index
    %20 = memref.load %arg1[%c3] : memref<7xf32, #tpu.memory_space<smem>>
    %21 = vector.broadcast %20 : f32 to vector<8x32xf32>
    %22 = arith.addf %19, %21 : vector<8x32xf32>
    %23 = arith.mulf %19, %22 : vector<8x32xf32>
    %c4 = arith.constant 4 : index
    %24 = memref.load %arg1[%c4] : memref<7xf32, #tpu.memory_space<smem>>
    %25 = vector.broadcast %24 : f32 to vector<8x32xf32>
    %26 = arith.addf %23, %25 : vector<8x32xf32>
    %cst_4 = arith.constant 3.000000e+01 : f32
    %27 = vector.broadcast %cst_4 : f32 to vector<8x32xf32>
    %28 = arith.subf %27, %15 : vector<8x32xf32>
    %29 = math.exp2 %28 : vector<8x32xf32>
    %30 = arith.mulf %26, %29 : vector<8x32xf32>
    %31 = math.floor %30 : vector<8x32xf32>
    %cst_5 = arith.constant 0.000000e+00 : f32
    %32 = vector.broadcast %cst_5 : f32 to vector<8x32xf32>
    %33 = arith.maximumf %31, %32 : vector<8x32xf32>
    %c5 = arith.constant 5 : index
    %34 = memref.load %arg1[%c5] : memref<7xf32, #tpu.memory_space<smem>>
    %35 = vector.broadcast %34 : f32 to vector<8x32xf32>
    %36 = arith.mulf %33, %35 : vector<8x32xf32>
    %37 = math.roundeven %36 : vector<8x32xf32>
    %c6 = arith.constant 6 : index
    %38 = memref.load %arg1[%c6] : memref<7xf32, #tpu.memory_space<smem>>
    %39 = vector.broadcast %38 : f32 to vector<8x32xf32>
    %40 = arith.mulf %37, %39 : vector<8x32xf32>
    %41 = math.roundeven %40 : vector<8x32xf32>
    %cst_6 = arith.constant 3.276700e+04 : f32
    %42 = vector.broadcast %cst_6 : f32 to vector<8x32xf32>
    %43 = arith.minimumf %41, %42 : vector<8x32xf32>
    %cst_7 = arith.constant dense<0.000000e+00> : vector<8xf32>
    %44 = vector.multi_reduction <add>, %43, %cst_7 [1] : vector<8x32xf32> to vector<8xf32>
    %45 = vector.shape_cast %44 : vector<8xf32> to vector<8x1xf32>
    %cst_8 = arith.constant 4.2949673E+9 : f32
    %46 = vector.broadcast %cst_8 : f32 to vector<8x1xf32>
    %47 = arith.divf %46, %45 : vector<8x1xf32>
    %48 = math.floor %47 : vector<8x1xf32>
    %cst_9 = arith.constant 5.96046448E-8 : f32
    %49 = vector.broadcast %cst_9 : f32 to vector<8x1xf32>
    %50 = arith.mulf %48, %49 : vector<8x1xf32>
    %51 = vector.broadcast %50 : vector<8x1xf32> to vector<8x32xf32>
    %52 = arith.mulf %43, %51 : vector<8x32xf32>
    %53 = math.floor %52 : vector<8x32xf32>
    %cst_10 = arith.constant 3.906250e-03 : f32
    %54 = vector.broadcast %cst_10 : f32 to vector<8x32xf32>
    %55 = arith.mulf %53, %54 : vector<8x32xf32>
    %c0_11 = arith.constant 0 : index
    %c0_12 = arith.constant 0 : index
    %56 = vector.load %arg3[%c0_11, %c0_12] : memref<8x32xf32, #tpu.memory_space<vmem>>, vector<8x32xf32>
    tpu.vector_store %arg3[%c0_11, %c0_12], %55 {strides = array<i32>} : memref<8x32xf32, #tpu.memory_space<vmem>>, vector<8x32xf32>,
    return
  }
  func.func @transform_0(%arg0: i32, %arg1: memref<7xf32, #tpu.memory_space<smem>>) -> (i32, i32) {
    %c0_i32 = arith.constant 0 : i32
    %c0_i32_0 = arith.constant 0 : i32
    return %arg0, %c0_i32 : i32, i32
  }
  func.func @transform_1(%arg0: i32, %arg1: memref<7xf32, #tpu.memory_space<smem>>) -> (i32, i32) {
    %c0_i32 = arith.constant 0 : i32
    %c0_i32_0 = arith.constant 0 : i32
    return %arg0, %c0_i32 : i32, i32
  }
}

</mosaic_0001>

<llo_original>
// kernel: int_softmax.1
$region0: #{int_softmax.1}
  #allocation0 [shape = 'u32[]', space=smem, size = 0x4, offset = 0x4, fixed_abs, tag = 'smem constant byte address 0x4 - core index']
  #allocation1 [shape = 'u32[144,128]{1,0:T(1,128)}', space=vmem, size = 0x12000, scoped, tag = 'internal scratch']
  #allocation2 [shape = 's32[1]{0}', space=sflag, size = 0x4, scoped, tag = 'scoped memory for int_softmax.1']
  #allocation3 [shape = 'u8[512]{0}', space=smem, size = 0x200, scoped, tag = 'prefetched SMEM operand 0']
  %s0 = inlined_call_operand.vmem [shape: f32[7], index: 0, kind: input, shape index: {}]
  %s1 = inlined_call_operand.vmem [shape: f32[64,32], index: 1, kind: input, shape index: {}]
  %s2 = inlined_call_operand.hbm [shape: f32[64,32], index: 2, kind: output, shape index: {}]
  %s3 = sld [smem:[#allocation0]]
  $region37: #{int_softmax.1} parent=0
    _
  %s5 = ssub.s32 1, %s3
  %s6 = scalar_select 0, %s5, %s3
  %s7 = sshll.u32 %s0, 4
  %s8 = int_to_ptr.vmem [resolvable:$true] %s7
  %10 = dma.vmem_to_smem %s8, 16, [#allocation3], [#allocation2]
  %11 = dma.done [#allocation2], 16
  %12 = sfence
  $region1: #{int_softmax.1} parent=0
    #allocation4 [shape = 'u8[8192]{0}', space=vmem, size = 0x2000, scoped, tag = 'output window, operand 0']
    #allocation5 [shape = 's32[2]{0}', space=sflag, size = 0x8, scoped, tag = 'scoped memory for int_softmax.1']
    %13 = vsyncpa [#allocation5], 0
    %s14 = scalar_lea.sflag [#allocation5], 1
    %15 = vsyncpa %s14, 0
    loop: start=0, step=1, limit=10
    $region2: #{int_softmax.1} parent=1 // loop_pre_header
      _
    $region3: #{int_softmax.1} parent=1 // loop_header
      %s17 = sphi 0, %s21
      %p18 = scmp.ge.s32.totalorder %s17, 10
      %s27 = sphi 0, %s29
      %s30 = sphi 0, %s27
      %s31 = sphi 0, %s30
      %s47 = sphi 0, %s31
      %s53 = sphi 0, %s55
      %s56 = sphi 0, %s53
      %s57 = sphi 0, %s56
      %s73 = sphi 0, %s57
    $region4: #{int_softmax.1} parent=1 // loop_header_branch
      %20 = sbr.rel (%p18) target = $region8
    $region5: #{int_softmax.1} parent=1 // loop_body
      %s22 = ssub.s32 %s17, 1
      %s23 = ssub.s32 %s17, 2
      %s24 = sadd.s32 %s17, 1
      %s25 = ssub.s32 %s17, %s24
      %p26 = scmp.eq.s32.totalorder %s25, 0
      %s28 = sadd.s32 %s27, 1
      %s29 = scalar_select %p26, %s27, %s28
      %p32 = pneg %p26
      %p33 = scmp.eq.s32.totalorder %s17, 7
      %p34 = por %p32, %p33
      %p35 = scmp.ne.s32.totalorder %s27, %s30
      %p36 = scmp.eq.s32.totalorder %s17, 0
      %p37 = por %p35, %p36
      %p38 = scmp.ne.s32.totalorder %s27, %s30
      %p39 = scmp.eq.s32.totalorder %s22, 7
      %p40 = por %p38, %p39
      %p41 = scmp.ne.s32.totalorder %s30, %s31
      %p42 = scmp.eq.s32.totalorder %s22, 0
      %p43 = por %p41, %p42
      %p44 = scmp.ne.s32.totalorder %s30, %s31
      %p45 = scmp.eq.s32.totalorder %s23, 7
      %p46 = por %p44, %p45
      %p48 = scmp.ne.s32.totalorder %s31, %s47
      %p49 = scmp.eq.s32.totalorder %s23, 0
      %p50 = por %p48, %p49
      %s51 = ssub.s32 %s17, %s24
      %p52 = scmp.eq.s32.totalorder %s51, 0
      %s54 = sadd.s32 %s53, 1
      %s55 = scalar_select %p52, %s53, %s54
      %p58 = pneg %p52
      %p59 = scmp.eq.s32.totalorder %s17, 7
      %p60 = por %p58, %p59
      %p61 = scmp.ne.s32.totalorder %s53, %s56
      %p62 = scmp.eq.s32.totalorder %s17, 0
      %p63 = por %p61, %p62
      %p64 = scmp.ne.s32.totalorder %s53, %s56
      %p65 = scmp.eq.s32.totalorder %s22, 7
      %p66 = por %p64, %p65
      %p67 = scmp.ne.s32.totalorder %s56, %s57
      %p68 = scmp.eq.s32.totalorder %s22, 0
      %p69 = por %p67, %p68
      %p70 = scmp.ne.s32.totalorder %s56, %s57
      %p71 = scmp.eq.s32.totalorder %s23, 7
      %p72 = por %p70, %p71
      %p74 = scmp.ne.s32.totalorder %s57, %s73
      %p75 = scmp.eq.s32.totalorder %s23, 0
      %p76 = por %p74, %p75
      %p77 = scmp.le.s32.totalorder 1, %s17
      %p78 = scmp.lt.s32.totalorder %s17, 9
      %p79 = pnand %p77, %p78
      %p80 = pneg %p79
      // Predicated region
      $region9: #{int_softmax.1} parent=5 // pred_check
        _
      $region10: #{int_softmax.1} parent=5 // pred_check_branch
        %82 = sbr.rel (%p79) target = $region12
      $region11: #{int_softmax.1} parent=5 // pred_region
        %s83 = ssub.s32 %s17, 1
      $region12: #{int_softmax.1} parent=5 // pred_fallthru
        _
      %p84 = scmp.lt.s32.totalorder %s17, 8
      // Predicated region
      $region13: #{int_softmax.1} parent=5 // pred_check
        %p85 = pneg %p84
      $region14: #{int_softmax.1} parent=5 // pred_check_branch
        %87 = sbr.rel (%p85) target = $region16
      $region15: #{int_softmax.1} parent=5 // pred_region
        // Predicated region
        $region17: #{int_softmax.1} parent=15 // pred_check
          %p88 = pneg %p37
        $region18: #{int_softmax.1} parent=15 // pred_check_branch
          %90 = sbr.rel (%p88) target = $region20
        $region19: #{int_softmax.1} parent=15 // pred_region
          %p91 = scmp.lt.s32.totalorder %s17, 7
          %s92 = scalar_select %p91, %s17, 7
          %s93 = smul.addr %s92, 8
          %s94 = scalar_lea.vmem %s1, %s93
        $region20: #{int_softmax.1} parent=15 // pred_fallthru
          _
      $region16: #{int_softmax.1} parent=5 // pred_fallthru
        _
      %p95 = scmp.le.s32.totalorder 1, %s17
      %p96 = scmp.lt.s32.totalorder %s17, 9
      %p97 = pnand %p95, %p96
      %p98 = pneg %p97
      // Predicated region
      $region21: #{int_softmax.1} parent=5 // pred_check
        _
      $region22: #{int_softmax.1} parent=5 // pred_check_branch
        %100 = sbr.rel (%p97) target = $region24
      $region23: #{int_softmax.1} parent=5 // pred_region
        %s101 = ssub.s32 %s17, 1
        %p102 = scmp.lt.s32.totalorder %s22, 7
        %s103 = scalar_select %p102, %s22, 7
        %s104 = smul.addr %s103, 8
        %s105 = scalar_lea.vmem %s1, %s104
        %p106 = pneg %p43
        %p107 = pneg %p40
        %p108 = pneg %p69
        %p109 = pneg %p66
        %s110 = sand.u32 %s56, 1
        %s111 = scalar_lea.sflag [#allocation5], %s110
        %s112 = sand.u32 %s56, 1
        %s113 = smul.addr %s112, 8
        %s114 = scalar_lea.vmem [#allocation4], %s113
        %p115 = scmp.lt.s32.totalorder %s22, 7
        %s116 = scalar_select %p115, %s22, 7
        %s117 = smul.addr %s116, 8
        %s118 = scalar_lea.vmem %s1, %s117
        %v119 = vld [vmem:[%s118] sm:$0xff]
        %s120 = sld [smem:[#allocation3]]
        %v121 = vstv %s120
        %v122 = vmul.f32 %v119, %v121
        %vm123 = vcmask 261120
        %v124 = vsel %vm123, %v122, -inf
        %125 = vmax.xlane.f32.xlu0 %v124
        %v126 = vpop.xlane.xlu0 %125
        %v127 = vsub.f32 %v122, %v126
        %s128 = sld [smem:[#allocation3 + $0x1]]
        %s129 = smul.f32 %s128, 30.0
        %v130 = vstv %s129
        %v131 = vmax.f32 %v127, %v130
        %s132 = sld [smem:[#allocation3 + $0x2]]
        %v133 = vstv %s132
        %v134 = vmul.f32 %v131, %v133
        %v135 = vfloor.f32 %v134
        %v136 = vstv %s128
        %v137 = vmul.f32 %v136, %v135
        %v138 = vsub.f32 %v131, %v137
        %s139 = sld [smem:[#allocation3 + $0x3]]
        %v140 = vstv %s139
        %v141 = vadd.f32 %v138, %v140
        %v142 = vmul.f32 %v138, %v141
        %s143 = sld [smem:[#allocation3 + $0x4]]
        %v144 = vstv %s143
        %v145 = vadd.f32 %v142, %v144
        %v146 = vsub.f32 30.0, %v135
        %v147 = vpow.pop %v146
        %v148 = vmul.f32 %v145, %v147
        %v149 = vfloor.f32 %v148
        %v150 = vmax.f32 %v149, 0.0
        %s151 = sld [smem:[#allocation3 + $0x5]]
        %v152 = vstv %s151
        %v153 = vmul.f32 %v150, %v152
        %v154 = vround.ne.pseudo %v153
        %s155 = sld [smem:[#allocation3 + $0x6]]
        %v156 = vstv %s155
        %v157 = vmul.f32 %v154, %v156
        %v158 = vround.ne.pseudo %v157
        %v159 = vmin.f32 %v158, 32767.0
        %v160 = vsel %vm123, %v159, 0.0
        %161 = vadd.xlane.f32.xlu0 %v160
        %v162 = vpop.xlane.xlu0 %161
        %v163 = vrcp.pop %v162
        %v164 = vmul.f32 4.2949673e+09, %v163
        %v165 = vfloor.f32 %v164
        %v166 = vmul.f32 %v165, 5.9604645e-08
        %v167 = vmul.f32 %v159, %v166
        %v168 = vfloor.f32 %v167
        %v169 = vmul.f32 %v168, 0.00390625
        %170 = vst.msk [vmem:[%s114] sm:$0xff] %vm123, %v169
        %s171 = sand.u32 %s56, 1
        %s172 = scalar_lea.sflag [#allocation5], %s171
        %s173 = sand.u32 %s56, 1
        %s174 = smul.addr %s173, 8
        %s175 = scalar_lea.vmem [#allocation4], %s174
        // Predicated region
        $region25: #{int_softmax.1} parent=23 // pred_check
          %p176 = pneg %p66
        $region26: #{int_softmax.1} parent=23 // pred_check_branch
          %178 = sbr.rel (%p176) target = $region28
        $region27: #{int_softmax.1} parent=23 // pred_region
          %s180 = ssub.s32 128, 128
          %181 = vsyncadd %s172, %s180
          %s182 = smul.addr %s22, 128
          %s183 = scalar_lea.hbm %s2, %s182
          %s185 = sshll.u32 %s175, 4
          %s186 = int_to_ptr.vmem [resolvable:$true] %s185
          %188 = dma.vmem_to_hbm [thread:$0]  %s186, 128, %s183, %s172
        $region28: #{int_softmax.1} parent=23 // pred_fallthru
          _
      $region24: #{int_softmax.1} parent=5 // pred_fallthru
        _
      %p189 = scmp.le.s32.totalorder 2, %s17
      // Predicated region
      $region29: #{int_softmax.1} parent=5 // pred_check
        %p190 = pneg %p189
      $region30: #{int_softmax.1} parent=5 // pred_check_branch
        %192 = sbr.rel (%p190) target = $region32
      $region31: #{int_softmax.1} parent=5 // pred_region
        %s193 = ssub.s32 %s17, 2
        // Predicated region
        $region33: #{int_softmax.1} parent=31 // pred_check
          %p194 = pneg %p72
        $region34: #{int_softmax.1} parent=31 // pred_check_branch
          %196 = sbr.rel (%p194) target = $region36
        $region35: #{int_softmax.1} parent=31 // pred_region
          %s197 = sand.u32 %s57, 1
          %s198 = scalar_lea.sflag [#allocation5], %s197
          %s199 = sand.u32 %s57, 1
          %s200 = smul.addr %s199, 8
          %s201 = scalar_lea.vmem [#allocation4], %s200
          %202 = dma.done %s198, 128
        $region36: #{int_softmax.1} parent=31 // pred_fallthru
          _
      $region32: #{int_softmax.1} parent=5 // pred_fallthru
        _
    $region6: #{int_softmax.1} parent=1 // loop_footer
      %s21 = sadd.s32 1, %s17
    $region7: #{int_softmax.1} parent=1 // loop_footer_branch
      %16 = sbr.rel target = $region3
    $region8: #{int_softmax.1} parent=1 // loop_exit
      _
    %203 = vsyncpa [#allocation5], 1
    %s204 = scalar_lea.sflag [#allocation5], 1
    %205 = vsyncpa %s204, 1

</llo_original>
